<compile_context>
chip_gen: v5e
topology: v5e:2x2
jax: 0.10.0
libtpu: 0.0.40
codegen_flags: <defaults>
</compile_context>

<pallas_src>
import math

import jax
import jax.numpy as jnp
from jax.experimental import pallas as pl
from jax.experimental.pallas import tpu as pltpu


_LANE = 128
_DEFAULT_BLOCK_BYTES = 8 << 20  # per-buffer target; capped per-generation below


def _round_up(x: int, m: int) -> int:
    return ((x + m - 1) // m) * m


def _sublane_multiple(dtype) -> int:
    """Sublane tiling multiple for a dtype (8 for 32-bit, 16 bf16, 32 int8)."""
    itemsize = jnp.dtype(dtype).itemsize
    if itemsize >= 4:
        return 8
    return 8 * (4 // itemsize)


def _vmem_capacity_bytes() -> int:
    """Physical VMEM of the current TPU generation (conservative fallback)."""
    try:
        cap = int(pltpu.get_tpu_info().vmem_capacity_bytes)
        if cap > 0:
            return cap
    except Exception:
        pass
    return 64 << 20  # v7x-sized fallback: never over-commit VMEM


def _tile_size(dim: int, limit: int, mult: int) -> int:
    """Pick a tile size for `dim`: the full dim if it fits `limit` (elements),
    else the largest multiple of `mult` <= limit, preferring exact divisors of
    `dim` (partial edge blocks are otherwise handled by Pallas masking)."""
    limit = max(int(limit), mult)
    if dim <= limit:
        return dim
    t = (limit // mult) * mult
    for cand in range(t, 0, -mult):
        if dim % cand == 0:
            return cand
    return t


def _maybe_split(dim: int, tile: int, mult: int) -> int:
    """If `tile` covers all of `dim`, roughly halve it (rounded to `mult`) so
    the grid exposes >= 2 blocks along this axis (keeps both v7x TensorCores
    busy); no-op when the dim is too small to split."""
    if tile >= dim and dim >= 2 * mult:
        half = max((((dim + 1) // 2) // mult) * mult, mult)
        if half < dim:
            return half
    return tile


def _swap_tile_kernel(x_ref, o_ref):
    # x_ref: (td0, 1, td1, tc) -> o_ref: (td1, 1, td0, tc).
    # Lane axis (tc) untouched; sublane-region swap — the actual block-level
    # transpose lives in the output index_map.
    o_ref[...] = jnp.swapaxes(x_ref[...], 0, 2)


def _transpose2d_kernel(x_ref, o_ref):
    # x_ref: (td0, td1) -> o_ref: (td1, td0); one dense lane transpose (XLU).
    o_ref[...] = x_ref[...].T


def pallas_transpose(
    x: jax.Array, dim0: int, dim1: int, *, target_block_bytes: int = _DEFAULT_BLOCK_BYTES
) -> jax.Array:
    ndim = x.ndim
    dim0 = dim0 % ndim
    dim1 = dim1 % ndim
    if dim0 == dim1:
        return x
    if dim0 > dim1:
        dim0, dim1 = dim1, dim0

    shape = x.shape
    out_shape = list(shape)
    out_shape[dim0], out_shape[dim1] = out_shape[dim1], out_shape[dim0]
    out_shape = tuple(out_shape)

    if x.size == 0:
        return jnp.swapaxes(x, dim0, dim1)

    a = math.prod(shape[:dim0])
    d0 = shape[dim0]
    b = math.prod(shape[dim0 + 1 : dim1])
    d1 = shape[dim1]
    c = math.prod(shape[dim1 + 1 :])

    itemsize = jnp.dtype(x.dtype).itemsize
    s_mult = _sublane_multiple(x.dtype)

    # --- generation-aware VMEM budgeting -------------------------------------
    vmem_cap = _vmem_capacity_bytes()          # 128 MiB v5e/v6e, 64 MiB v7x
    usable = (vmem_cap * 3) // 4               # leave compiler headroom
    block_bytes = min(int(target_block_bytes), usable // 8)
    block_bytes = max(block_bytes, itemsize * s_mult * _LANE)
    # 2 in + 2 out double-buffered blocks (plus padding slack) must fit.
    vmem_limit = int(min(usable, 6 * block_bytes + (4 << 20)))
    budget = block_bytes // itemsize           # *padded* elements per buffer

    if c == 1:
        # dim1 is the minor-most (lane) axis: dense 2-D lane transposes.
        # A and B are squeezed into the grid; td0/td1 are full dims or
        # multiples of 128 so both loads and stores are lane-dense.
        x4 = x.reshape(a, d0, b, d1)
        t_bal = max(math.isqrt(budget), _LANE)
        td0 = _tile_size(d0, t_bal, _LANE)
        td1 = _tile_size(d1, budget // max(_round_up(td0, _LANE), _LANE), _LANE)
        if a * b * pl.cdiv(d0, td0) * pl.cdiv(d1, td1) == 1:
            td1 = _maybe_split(d1, td1, _LANE)
            if pl.cdiv(d1, td1) == 1:
                td0 = _maybe_split(d0, td0, _LANE)
        grid = (a, b, pl.cdiv(d0, td0), pl.cdiv(d1, td1))
        out4 = pl.pallas_call(
            _transpose2d_kernel,
            out_shape=jax.ShapeDtypeStruct((a, d1, b, d0), x.dtype),
            grid=grid,
            in_specs=[
                pl.BlockSpec(
                    (None, td0, None, td1),
                    lambda ai, bi, i0, i1: (ai, i0, bi, i1),
                )
            ],
            out_specs=pl.BlockSpec(
                (None, td1, None, td0),
                lambda ai, bi, i0, i1: (ai, i1, bi, i0),
            ),
            compiler_params=pltpu.CompilerParams(
                dimension_semantics=("parallel",) * len(grid),
                vmem_limit_bytes=vmem_limit,
            ),
        )(x4)
        return out4.reshape(out_shape)

    # --- general case: the contiguous trailing axis C stays the lane axis ----
    x5 = x.reshape(a, d0, b, d1, c)
    tc = _tile_size(c, max(budget // (s_mult * s_mult), _LANE), _LANE)
    tc_pad = _round_up(tc, _LANE)
    rem = max(budget // tc_pad, s_mult * s_mult)   # room for td0 x td1 (padded)
    t_bal = max(math.isqrt(rem), s_mult)
    # td0 first: output HBM writes are contiguous over td0 * C elements.
    td0 = _tile_size(d0, t_bal, s_mult)
    td1 = _tile_size(d1, rem // max(_round_up(td0, s_mult), s_mult), s_mult)
    if a * b * pl.cdiv(d0, td0) * pl.cdiv(d1, td1) * pl.cdiv(c, tc) == 1:
        td1 = _maybe_split(d1, td1, s_mult)
        if pl.cdiv(d1, td1) == 1:
            td0 = _maybe_split(d0, td0, s_mult)
        if pl.cdiv(d0, td0) * pl.cdiv(d1, td1) == 1:
            tc = _maybe_split(c, tc, _LANE)
    grid = (a, b, pl.cdiv(d0, td0), pl.cdiv(d1, td1), pl.cdiv(c, tc))
    out5 = pl.pallas_call(
        _swap_tile_kernel,
        out_shape=jax.ShapeDtypeStruct((a, d1, b, d0, c), x.dtype),
        grid=grid,
        in_specs=[
            pl.BlockSpec(
                (None, td0, 1, td1, tc),
                lambda ai, bi, i0, i1, ic: (ai, i0, bi, i1, ic),
            )
        ],
        out_specs=pl.BlockSpec(
            (None, td1, 1, td0, tc),
            lambda ai, bi, i0, i1, ic: (ai, i1, bi, i0, ic),
        ),
        compiler_params=pltpu.CompilerParams(
            dimension_semantics=("parallel",) * len(grid),
            vmem_limit_bytes=vmem_limit,
        ),
    )(x5)
    return out5.reshape(out_shape)


class Transpose:
    """Pallas equivalent of refiners fl.Transpose(dim0, dim1)."""

    def __init__(self, dim0: int, dim1: int) -> None:
        self.dim0 = dim0
        self.dim1 = dim1

    def __call__(self, x: jax.Array) -> jax.Array:
        return pallas_transpose(x, self.dim0, self.dim1)


if __name__ == "__main__":
    key = jax.random.PRNGKey(0)
    keys = jax.random.split(key, 9)

    def _check(y, x, dim0, dim1):
        ref = jnp.swapaxes(x, dim0, dim1)
        assert y.shape == ref.shape, (y.shape, ref.shape)
        assert y.dtype == x.dtype
        assert bool(jnp.array_equal(y, ref)), (
            f"mismatch for dims ({dim0},{dim1}) shape {x.shape}"
        )

    # 1) NCHW-ish swap of channel/height (general path, small c=16).
    x1 = jax.random.normal(keys[0], (2, 4, 16, 16), dtype=jnp.float32)
    y1 = jax.block_until_ready(Transpose(1, 2)(x1))
    _check(y1, x1, 1, 2)

    # 2) Non-adjacent swap with lane-dense trailing axis (general path, b>1).
    x2 = jax.random.normal(keys[1], (2, 4, 8, 128), dtype=jnp.float32)
    y2 = jax.block_until_ready(Transpose(0, 2)(x2))
    _check(y2, x2, 0, 2)

    # 3) Docstring example: last-two-dims swap (c == 1 path, b == 1).
    x3 = jax.random.normal(keys[2], (10, 20, 30), dtype=jnp.float32)
    y3 = jax.block_until_ready(Transpose(1, 2)(x3))
    assert y3.shape == (10, 30, 20)
    _check(y3, x3, 1, 2)

    # 4) Swap with the last dim across intermediate axes (c == 1, b > 1).
    x4 = jax.random.normal(keys[3], (2, 8, 4, 16), dtype=jnp.float32)
    y4 = jax.block_until_ready(Transpose(1, 3)(x4))
    _check(y4, x4, 1, 3)

    # 5) Force d0/d1 tiling on the general path with a small block budget.
    x5 = jax.random.normal(keys[4], (2, 32, 48, 128), dtype=jnp.float32)
    y5 = jax.block_until_ready(pallas_transpose(x5, 1, 2, target_block_bytes=64 * 1024))
    _check(y5, x5, 1, 2)

    # 6) bf16 (sublane packing factor 16) with forced tiling on the general path.
    x6 = jax.random.normal(keys[5], (2, 32, 32, 16), dtype=jnp.bfloat16)
    y6 = jax.block_until_ready(pallas_transpose(x6, 1, 2, target_block_bytes=16 * 1024))
    _check(y6, x6, 1, 2)

    # 7) c == 1 path with 128-tiles and partial edge blocks (200 % 128 != 0).
    x7 = jax.random.normal(keys[6], (1, 200, 200), dtype=jnp.float32)
    y7 = jax.block_until_ready(pallas_transpose(x7, 1, 2, target_block_bytes=64 * 1024))
    _check(y7, x7, 1, 2)

    # 8) c == 1 with an awkward middle extent (b=10) and d1 tiling.
    x8 = jax.random.normal(keys[7], (2, 16, 10, 256), dtype=jnp.float32)
    y8 = jax.block_until_ready(pallas_transpose(x8, 1, 3, target_block_bytes=64 * 1024))
    _check(y8, x8, 1, 3)

    # 9) Plain 2-D transpose: exercises the >=2-block megacore split.
    x9 = jax.random.normal(keys[8], (256, 384), dtype=jnp.float32)
    y9 = jax.block_until_ready(Transpose(0, 1)(x9))
    _check(y9, x9, 0, 1)

    print("KERNEL_OK")
</pallas_src>

<mosaic_0001>
module attributes {stable_mosaic.version = 11 : i64} {
  func.func @_swap_tile_kernel(%arg0: i32, %arg1: i32, %arg2: i32, %arg3: i32, %arg4: i32, %arg5: memref<1x4x1x16x16xf32, #tpu.memory_space<vmem>>, %arg6: memref<1x16x1x4x16xf32, #tpu.memory_space<vmem>>) attributes {dimension_semantics = [#tpu.dimension_semantics<parallel>, #tpu.dimension_semantics<parallel>, #tpu.dimension_semantics<parallel>, #tpu.dimension_semantics<parallel>, #tpu.dimension_semantics<parallel>], iteration_bounds = array<i64: 2, 1, 1, 1, 1>, scalar_prefetch = 0 : i64, scratch_operands = 0 : i64, tpu.core_type = #tpu.core_type<tc>, window_params = [{transform_indices = @transform_0, window_bounds = array<i64: 1, 4, 1, 16, 16>}, {transform_indices = @transform_1, window_bounds = array<i64: 1, 16, 1, 4, 16>}]} {
    %c0 = arith.constant 0 : index
    %c0_0 = arith.constant 0 : index
    %c0_1 = arith.constant 0 : index
    %c0_2 = arith.constant 0 : index
    %c0_3 = arith.constant 0 : index
    %0 = vector.load %arg5[%c0, %c0_0, %c0_1, %c0_2, %c0_3] : memref<1x4x1x16x16xf32, #tpu.memory_space<vmem>>, vector<1x4x1x16x16xf32>
    %1 = vector.shape_cast %0 : vector<1x4x1x16x16xf32> to vector<4x1x16x16xf32>
    %2 = tpu.transpose %1, [2, 1, 0, 3] : vector<4x1x16x16xf32> -> vector<16x1x4x16xf32>
    %c0_4 = arith.constant 0 : index
    %c0_5 = arith.constant 0 : index
    %c0_6 = arith.constant 0 : index
    %c0_7 = arith.constant 0 : index
    %c0_8 = arith.constant 0 : index
    %3 = vector.load %arg6[%c0_4, %c0_5, %c0_6, %c0_7, %c0_8] : memref<1x16x1x4x16xf32, #tpu.memory_space<vmem>>, vector<1x16x1x4x16xf32>
    %4 = vector.shape_cast %3 : vector<1x16x1x4x16xf32> to vector<16x1x4x16xf32>
    %5 = vector.shape_cast %2 : vector<16x1x4x16xf32> to vector<1x16x1x4x16xf32>
    tpu.vector_store %arg6[%c0_4, %c0_5, %c0_6, %c0_7, %c0_8], %5 {strides = array<i32>} : memref<1x16x1x4x16xf32, #tpu.memory_space<vmem>>, vector<1x16x1x4x16xf32>,
    return
  }
  func.func @transform_0(%arg0: i32, %arg1: i32, %arg2: i32, %arg3: i32, %arg4: i32) -> (i32, i32, i32, i32, i32) {
    %c0_i32 = arith.constant 0 : i32
    return %arg0, %arg2, %arg1, %arg3, %arg4 : i32, i32, i32, i32, i32
  }
  func.func @transform_1(%arg0: i32, %arg1: i32, %arg2: i32, %arg3: i32, %arg4: i32) -> (i32, i32, i32, i32, i32) {
    %c0_i32 = arith.constant 0 : i32
    return %arg0, %arg3, %arg1, %arg2, %arg4 : i32, i32, i32, i32, i32
  }
}

</mosaic_0001>

<llo_original>
// kernel: tpu_custom_call.1
$region0: #{tpu_custom_call.1}
  #allocation0 [shape = 'u32[]', space=smem, size = 0x4, offset = 0x4, fixed_abs, tag = 'smem constant byte address 0x4 - core index']
  #allocation1 [shape = 'u32[72,128]{1,0:T(1,128)}', space=vmem, size = 0x9000, scoped, tag = 'internal scratch']
  %s0 = inlined_call_operand.hbm [shape: f32[2,4,1,16,16], index: 0, kind: input, shape index: {}]
  %s1 = inlined_call_operand.hbm [shape: f32[2,16,1,4,16], index: 1, kind: output, shape index: {}]
  %s2 = sld [smem:[#allocation0]]
  $region41: #{tpu_custom_call.1} parent=0
    _
  %s4 = ssub.s32 1, %s2
  %s5 = scalar_select 0, %s4, %s2
  $region1: #{tpu_custom_call.1} parent=0
    #allocation2 [shape = 'u8[65536]{0}', space=vmem, size = 0x10000, scoped, tag = 'input window, operand 0']
    #allocation3 [shape = 's32[2]{0}', space=sflag, size = 0x8, scoped, tag = 'scoped memory for tpu_custom_call.1']
    #allocation4 [shape = 's32[2]{0}', space=sflag, size = 0x8, scoped, tag = 'scoped memory for tpu_custom_call.1']
    #allocation5 [shape = 'u8[65536]{0}', space=vmem, size = 0x10000, scoped, tag = 'output window, operand 0']
    %6 = vsyncpa [#allocation3], 0
    %s7 = scalar_lea.sflag [#allocation3], 1
    %8 = vsyncpa %s7, 0
    %9 = vsyncpa [#allocation4], 0
    %s10 = scalar_lea.sflag [#allocation4], 1
    %11 = vsyncpa %s10, 0
    loop: start=0, step=1, limit=4
    $region2: #{tpu_custom_call.1} parent=1 // loop_pre_header
      _
    $region3: #{tpu_custom_call.1} parent=1 // loop_header
      %s13 = sphi 0, %s17
      %p14 = scmp.ge.s32.totalorder %s13, 4
      %s20 = sphi 0, %s53
      %s21 = sphi 0, %s49
      %s22 = sphi 0, %s45
      %s23 = sphi 0, %s41
      %s24 = sphi 0, %s37
      %s25 = sphi 0, %s20
      %s26 = sphi 0, %s21
      %s27 = sphi 0, %s22
      %s28 = sphi 0, %s23
      %s29 = sphi 0, %s24
      %s30 = sphi 0, %s25
      %s31 = sphi 0, %s26
      %s32 = sphi 0, %s27
      %s33 = sphi 0, %s28
      %s34 = sphi 0, %s29
      %s64 = sphi 0, %s66
      %s67 = sphi 0, %s64
      %s68 = sphi 0, %s67
      %s84 = sphi 0, %s68
      %s98 = sphi 0, %s100
      %s101 = sphi 0, %s98
      %s102 = sphi 0, %s101
      %s118 = sphi 0, %s102
    $region4: #{tpu_custom_call.1} parent=1 // loop_header_branch
      %16 = sbr.rel (%p14) target = $region8
    $region5: #{tpu_custom_call.1} parent=1 // loop_body
      %s18 = ssub.s32 %s13, 1
      %s19 = ssub.s32 %s13, 2
      %s35 = sadd.s32 1, %s24
      %p36 = scmp.ge.s32.totalorder %s35, 1
      %s37 = scalar_select %p36, 0, %s35
      %s38 = sadd.s32 1, %s23
      %s39 = scalar_select %p36, %s38, %s23
      %p40 = scmp.ge.s32.totalorder %s39, 1
      %s41 = scalar_select %p40, 0, %s39
      %s42 = sadd.s32 1, %s22
      %s43 = scalar_select %p40, %s42, %s22
      %p44 = scmp.ge.s32.totalorder %s43, 1
      %s45 = scalar_select %p44, 0, %s43
      %s46 = sadd.s32 1, %s21
      %s47 = scalar_select %p44, %s46, %s21
      %p48 = scmp.ge.s32.totalorder %s47, 1
      %s49 = scalar_select %p48, 0, %s47
      %s50 = sadd.s32 1, %s20
      %s51 = scalar_select %p48, %s50, %s20
      %p52 = scmp.ge.s32.totalorder %s51, 2
      %s53 = scalar_select %p52, 0, %s51
      %s54 = ssub.s32 %s20, %s53
      %s55 = ssub.s32 %s22, %s45
      %s56 = sor.u32 %s54, %s55
      %s57 = ssub.s32 %s21, %s49
      %s58 = sor.u32 %s56, %s57
      %s59 = ssub.s32 %s23, %s41
      %s60 = sor.u32 %s58, %s59
      %s61 = ssub.s32 %s24, %s37
      %s62 = sor.u32 %s60, %s61
      %p63 = scmp.eq.s32.totalorder %s62, 0
      %s65 = sadd.s32 %s64, 1
      %s66 = scalar_select %p63, %s64, %s65
      %p69 = pneg %p63
      %p70 = scmp.eq.s32.totalorder %s13, 1
      %p71 = por %p69, %p70
      %p72 = scmp.ne.s32.totalorder %s64, %s67
      %p73 = scmp.eq.s32.totalorder %s13, 0
      %p74 = por %p72, %p73
      %p75 = scmp.ne.s32.totalorder %s64, %s67
      %p76 = scmp.eq.s32.totalorder %s18, 1
      %p77 = por %p75, %p76
      %p78 = scmp.ne.s32.totalorder %s67, %s68
      %p79 = scmp.eq.s32.totalorder %s18, 0
      %p80 = por %p78, %p79
      %p81 = scmp.ne.s32.totalorder %s67, %s68
      %p82 = scmp.eq.s32.totalorder %s19, 1
      %p83 = por %p81, %p82
      %p85 = scmp.ne.s32.totalorder %s68, %s84
      %p86 = scmp.eq.s32.totalorder %s19, 0
      %p87 = por %p85, %p86
      %s88 = ssub.s32 %s20, %s53
      %s89 = ssub.s32 %s23, %s41
      %s90 = sor.u32 %s88, %s89
      %s91 = ssub.s32 %s21, %s49
      %s92 = sor.u32 %s90, %s91
      %s93 = ssub.s32 %s22, %s45
      %s94 = sor.u32 %s92, %s93
      %s95 = ssub.s32 %s24, %s37
      %s96 = sor.u32 %s94, %s95
      %p97 = scmp.eq.s32.totalorder %s96, 0
      %s99 = sadd.s32 %s98, 1
      %s100 = scalar_select %p97, %s98, %s99
      %p103 = pneg %p97
      %p104 = scmp.eq.s32.totalorder %s13, 1
      %p105 = por %p103, %p104
      %p106 = scmp.ne.s32.totalorder %s98, %s101
      %p107 = scmp.eq.s32.totalorder %s13, 0
      %p108 = por %p106, %p107
      %p109 = scmp.ne.s32.totalorder %s98, %s101
      %p110 = scmp.eq.s32.totalorder %s18, 1
      %p111 = por %p109, %p110
      %p112 = scmp.ne.s32.totalorder %s101, %s102
      %p113 = scmp.eq.s32.totalorder %s18, 0
      %p114 = por %p112, %p113
      %p115 = scmp.ne.s32.totalorder %s101, %s102
      %p116 = scmp.eq.s32.totalorder %s19, 1
      %p117 = por %p115, %p116
      %p119 = scmp.ne.s32.totalorder %s102, %s118
      %p120 = scmp.eq.s32.totalorder %s19, 0
      %p121 = por %p119, %p120
      %p122 = scmp.le.s32.totalorder 1, %s13
      %p123 = scmp.lt.s32.totalorder %s13, 3
      %p124 = pnand %p122, %p123
      %p125 = pneg %p124
      // Predicated region
      $region9: #{tpu_custom_call.1} parent=5 // pred_check
        _
      $region10: #{tpu_custom_call.1} parent=5 // pred_check_branch
        %127 = sbr.rel (%p124) target = $region12
      $region11: #{tpu_custom_call.1} parent=5 // pred_region
        %s128 = ssub.s32 %s13, 1
      $region12: #{tpu_custom_call.1} parent=5 // pred_fallthru
        _
      %p129 = scmp.lt.s32.totalorder %s13, 2
      // Predicated region
      $region13: #{tpu_custom_call.1} parent=5 // pred_check
        %p130 = pneg %p129
      $region14: #{tpu_custom_call.1} parent=5 // pred_check_branch
        %132 = sbr.rel (%p130) target = $region16
      $region15: #{tpu_custom_call.1} parent=5 // pred_region
        // Predicated region
        $region17: #{tpu_custom_call.1} parent=15 // pred_check
          %p133 = pneg %p74
        $region18: #{tpu_custom_call.1} parent=15 // pred_check_branch
          %135 = sbr.rel (%p133) target = $region20
        $region19: #{tpu_custom_call.1} parent=15 // pred_region
          %s136 = sand.u32 %s64, 1
          %s137 = scalar_lea.sflag [#allocation3], %s136
          %s138 = sand.u32 %s64, 1
          %s139 = smul.addr %s138, 64
          %s140 = scalar_lea.vmem [#allocation2], %s139
          %s141 = smul.u32 4, %s22
          %s142 = smul.u32 2, %s23
          %144 = vsyncadd %s137, 0
          %s145 = sadd.s32 %s24, %s142
          %s146 = smul.addr %s21, 2
          %s147 = sadd.s32 %s145, %s146
          %s148 = smul.addr %s141, 2
          %s149 = sadd.s32 %s147, %s148
          %s150 = smul.addr %s20, 8
          %s151 = sadd.s32 %s149, %s150
          %s152 = smul.addr %s151, 8
          %s153 = scalar_lea.hbm %s0, %s152
          %s154 = sshll.u32 %s153, 4
          %s155 = int_to_ptr.hbm [resolvable:$true] %s154
          %s156 = sshll.u32 %s140, 4
          %s157 = int_to_ptr.vmem [resolvable:$true] %s156
          %162 = dma.hbm_to_vmem [thread:$0]  %s155, 1024, %s157, %s137, 128, 128, 8
        $region20: #{tpu_custom_call.1} parent=15 // pred_fallthru
          _
      $region16: #{tpu_custom_call.1} parent=5 // pred_fallthru
        _
      %p163 = scmp.le.s32.totalorder 1, %s13
      %p164 = scmp.lt.s32.totalorder %s13, 3
      %p165 = pnand %p163, %p164
      %p166 = pneg %p165
      // Predicated region
      $region21: #{tpu_custom_call.1} parent=5 // pred_check
        _
      $region22: #{tpu_custom_call.1} parent=5 // pred_check_branch
        %168 = sbr.rel (%p165) target = $region24
      $region23: #{tpu_custom_call.1} parent=5 // pred_region
        %s169 = ssub.s32 %s13, 1
        %s170 = sand.u32 %s67, 1
        %s171 = scalar_lea.sflag [#allocation3], %s170
        %s172 = sand.u32 %s67, 1
        %s173 = smul.addr %s172, 64
        %s174 = scalar_lea.vmem [#allocation2], %s173
        // Predicated region
        $region25: #{tpu_custom_call.1} parent=23 // pred_check
          %p175 = pneg %p80
        $region26: #{tpu_custom_call.1} parent=23 // pred_check_branch
          %177 = sbr.rel (%p175) target = $region28
        $region27: #{tpu_custom_call.1} parent=23 // pred_region
          %179 = dma.done %s171, 1024
        $region28: #{tpu_custom_call.1} parent=23 // pred_fallthru
          _
        %s180 = sand.u32 %s67, 1
        %s181 = scalar_lea.sflag [#allocation3], %s180
        %s182 = sand.u32 %s67, 1
        %s183 = smul.addr %s182, 64
        %s184 = scalar_lea.vmem [#allocation2], %s183
        %p185 = pneg %p80
        %p186 = pneg %p77
        %p187 = pneg %p114
        %p188 = pneg %p111
        %s189 = sand.u32 %s101, 1
        %s190 = scalar_lea.sflag [#allocation4], %s189
        %s191 = sand.u32 %s101, 1
        %s192 = smul.addr %s191, 64
        %s193 = scalar_lea.vmem [#allocation5], %s192
        %s194 = smul.u32 4, %s27
        %s195 = smul.u32 2, %s28
        %s196 = smul.u32 16, %s28
        %v197 = vld [vmem:[%s174] sm:$0xff]
        %v198 = vld [vmem:[%s174 + $0x8] sm:$0xff]
        %v199 = vld [vmem:[%s174 + $0x10] sm:$0xff]
        %v200 = vld [vmem:[%s174 + $0x18] sm:$0xff]
        %v201 = vld [vmem:[%s174 + $0x20] sm:$0xff]
        %v202 = vld [vmem:[%s174 + $0x28] sm:$0xff]
        %v203 = vld [vmem:[%s174 + $0x30] sm:$0xff]
        %v204 = vld [vmem:[%s174 + $0x38] sm:$0xff]
        %v205 = vrot.slane %v201, 4
        %vm206 = vcmask 1047556
        %v207 = vsel %vm206, %v205, %v197
        %v208 = vrot.slane %v197, 4
        %v209 = vsel %vm206, %v201, %v208
        %v211 = vunpack.c.l.s4 1983009808
        %v212 = vunpack.c.0.s8 %v211
        %v213 = vperm.slane %v207, %v212
        %v215 = vunpack.c.l.s4 1983009808
        %v216 = vunpack.c.0.s8 %v215
        %v217 = vperm.slane %v209, %v216
        %v218 = vrot.slane %v203, 4
        %v219 = vsel %vm206, %v218, %v199
        %v220 = vrot.slane %v199, 4
        %v221 = vsel %vm206, %v203, %v220
        %v223 = vunpack.c.l.s4 1983009808
        %v224 = vunpack.c.0.s8 %v223
        %v225 = vperm.slane %v219, %v224
        %v227 = vunpack.c.l.s4 1983009808
        %v228 = vunpack.c.0.s8 %v227
        %v229 = vperm.slane %v221, %v228
        %v230 = vrot.slane %v225, 4
        %v231 = vsel %vm206, %v230, %v213
        %v232 = vrot.slane %v213, 4
        %v233 = vsel %vm206, %v225, %v232
        %v235 = vunpack.c.l.s4 1934713408
        %v236 = vunpack.c.0.s8 %v235
        %v237 = vperm.slane %v231, %v236
        %v239 = vunpack.c.l.s4 1934713408
        %v240 = vunpack.c.0.s8 %v239
        %v241 = vperm.slane %v233, %v240
        %v242 = vrot.slane %v229, 4
        %v243 = vsel %vm206, %v242, %v217
        %v244 = vrot.slane %v217, 4
        %v245 = vsel %vm206, %v229, %v244
        %v247 = vunpack.c.l.s4 1934713408
        %v248 = vunpack.c.0.s8 %v247
        %v249 = vperm.slane %v243, %v248
        %v251 = vunpack.c.l.s4 1934713408
        %v252 = vunpack.c.0.s8 %v251
        %v253 = vperm.slane %v245, %v252
        %v254 = vrot.slane %v237, 4
        %v255 = vsel %vm206, 0.0, %v254
        %v256 = vrot.slane %v241, 4
        %v257 = vsel %vm206, 0.0, %v256
        %v258 = vrot.slane %v249, 4
        %v259 = vsel %vm206, 0.0, %v258
        %v260 = vrot.slane %v253, 4
        %v261 = vsel %vm206, 0.0, %v260
        %v262 = vrot.slane %v202, 4
        %v263 = vsel %vm206, %v262, %v198
        %v264 = vrot.slane %v198, 4
        %v265 = vsel %vm206, %v202, %v264
        %v267 = vunpack.c.l.s4 1983009808
        %v268 = vunpack.c.0.s8 %v267
        %v269 = vperm.slane %v263, %v268
        %v271 = vunpack.c.l.s4 1983009808
        %v272 = vunpack.c.0.s8 %v271
        %v273 = vperm.slane %v265, %v272
        %v274 = vrot.slane %v204, 4
        %v275 = vsel %vm206, %v274, %v200
        %v276 = vrot.slane %v200, 4
        %v277 = vsel %vm206, %v204, %v276
        %v279 = vunpack.c.l.s4 1983009808
        %v280 = vunpack.c.0.s8 %v279
        %v281 = vperm.slane %v275, %v280
        %v283 = vunpack.c.l.s4 1983009808
        %v284 = vunpack.c.0.s8 %v283
        %v285 = vperm.slane %v277, %v284
        %v286 = vrot.slane %v281, 4
        %v287 = vsel %vm206, %v286, %v269
        %v288 = vrot.slane %v269, 4
        %v289 = vsel %vm206, %v281, %v288
        %v291 = vunpack.c.l.s4 1934713408
        %v292 = vunpack.c.0.s8 %v291
        %v293 = vperm.slane %v287, %v292
        %v295 = vunpack.c.l.s4 1934713408
        %v296 = vunpack.c.0.s8 %v295
        %v297 = vperm.slane %v289, %v296
        %v298 = vrot.slane %v285, 4
        %v299 = vsel %vm206, %v298, %v273
        %v300 = vrot.slane %v273, 4
        %v301 = vsel %vm206, %v285, %v300
        %v303 = vunpack.c.l.s4 1934713408
        %v304 = vunpack.c.0.s8 %v303
        %v305 = vperm.slane %v299, %v304
        %v307 = vunpack.c.l.s4 1934713408
        %v308 = vunpack.c.0.s8 %v307
        %v309 = vperm.slane %v301, %v308
        %v310 = vrot.slane %v293, 4
        %v311 = vsel %vm206, 0.0, %v310
        %v312 = vrot.slane %v297, 4
        %v313 = vsel %vm206, 0.0, %v312
        %v314 = vrot.slane %v305, 4
        %v315 = vsel %vm206, 0.0, %v314
        %v316 = vrot.slane %v309, 4
        %v317 = vsel %vm206, 0.0, %v316
        %vm318 = vcmask 125952
        %319 = vst.msk [vmem:[%s193] sm:$0xf] %vm318, %v237
        %320 = vst.msk [vmem:[%s193 + $0x4] sm:$0xf] %vm318, %v255
        %321 = vst.msk [vmem:[%s193 + $0x8] sm:$0xf] %vm318, %v241
        %322 = vst.msk [vmem:[%s193 + $0xc] sm:$0xf] %vm318, %v257
        %323 = vst.msk [vmem:[%s193 + $0x10] sm:$0xf] %vm318, %v249
        %324 = vst.msk [vmem:[%s193 + $0x14] sm:$0xf] %vm318, %v259
        %325 = vst.msk [vmem:[%s193 + $0x18] sm:$0xf] %vm318, %v253
        %326 = vst.msk [vmem:[%s193 + $0x1c] sm:$0xf] %vm318, %v261
        %327 = vst.msk [vmem:[%s193 + $0x20] sm:$0xf] %vm318, %v293
        %328 = vst.msk [vmem:[%s193 + $0x24] sm:$0xf] %vm318, %v311
        %329 = vst.msk [vmem:[%s193 + $0x28] sm:$0xf] %vm318, %v297
        %330 = vst.msk [vmem:[%s193 + $0x2c] sm:$0xf] %vm318, %v313
        %331 = vst.msk [vmem:[%s193 + $0x30] sm:$0xf] %vm318, %v305
        %332 = vst.msk [vmem:[%s193 + $0x34] sm:$0xf] %vm318, %v315
        %333 = vst.msk [vmem:[%s193 + $0x38] sm:$0xf] %vm318, %v309
        %334 = vst.msk [vmem:[%s193 + $0x3c] sm:$0xf] %vm318, %v317
        %s335 = sand.u32 %s101, 1
        %s336 = scalar_lea.sflag [#allocation4], %s335
        %s337 = sand.u32 %s101, 1
        %s338 = smul.addr %s337, 64
        %s339 = scalar_lea.vmem [#allocation5], %s338
        // Predicated region
        $region29: #{tpu_custom_call.1} parent=23 // pred_check
          %p340 = pneg %p111
        $region30: #{tpu_custom_call.1} parent=23 // pred_check_branch
          %342 = sbr.rel (%p340) target = $region32
        $region31: #{tpu_custom_call.1} parent=23 // pred_region
          %s343 = smul.u32 16, %s28
          %345 = vsyncadd %s336, 0
          %s346 = sadd.s32 %s29, %s27
          %s347 = sadd.s32 %s346, %s26
          %s348 = sadd.s32 %s347, %s343
          %s349 = smul.addr %s25, 16
          %s350 = sadd.s32 %s348, %s349
          %s351 = smul.addr %s350, 4
          %s352 = scalar_lea.hbm %s1, %s351
          %s353 = sshll.u32 %s339, 4
          %s354 = int_to_ptr.vmem [resolvable:$true] %s353
          %s355 = sshll.u32 %s352, 4
          %s356 = int_to_ptr.hbm [resolvable:$true] %s355
          %361 = dma.vmem_to_hbm [thread:$0]  %s354, 1024, %s356, %s336, 64, 64, 4
        $region32: #{tpu_custom_call.1} parent=23 // pred_fallthru
          _
      $region24: #{tpu_custom_call.1} parent=5 // pred_fallthru
        _
      %p362 = scmp.le.s32.totalorder 2, %s13
      // Predicated region
      $region33: #{tpu_custom_call.1} parent=5 // pred_check
        %p363 = pneg %p362
      $region34: #{tpu_custom_call.1} parent=5 // pred_check_branch
        %365 = sbr.rel (%p363) target = $region36
      $region35: #{tpu_custom_call.1} parent=5 // pred_region
        %s366 = ssub.s32 %s13, 2
        // Predicated region
        $region37: #{tpu_custom_call.1} parent=35 // pred_check
          %p367 = pneg %p117
        $region38: #{tpu_custom_call.1} parent=35 // pred_check_branch
          %369 = sbr.rel (%p367) target = $region40
        $region39: #{tpu_custom_call.1} parent=35 // pred_region
          %s370 = sand.u32 %s102, 1
          %s371 = scalar_lea.sflag [#allocation4], %s370
          %s372 = sand.u32 %s102, 1
          %s373 = smul.addr %s372, 64
          %s374 = scalar_lea.vmem [#allocation5], %s373
          %376 = dma.done %s371, 1024
        $region40: #{tpu_custom_call.1} parent=35 // pred_fallthru
          _
      $region36: #{tpu_custom_call.1} parent=5 // pred_fallthru
        _
    $region6: #{tpu_custom_call.1} parent=1 // loop_footer
      %s17 = sadd.s32 1, %s13
    $region7: #{tpu_custom_call.1} parent=1 // loop_footer_branch
      %12 = sbr.rel target = $region3
    $region8: #{tpu_custom_call.1} parent=1 // loop_exit
      _
    %377 = vsyncpa [#allocation3], 1
    %s378 = scalar_lea.sflag [#allocation3], 1
    %379 = vsyncpa %s378, 1
    %380 = vsyncpa [#allocation4], 1
    %s381 = scalar_lea.sflag [#allocation4], 1
    %382 = vsyncpa %s381, 1

</llo_original>
